<compile_context>
chip_gen: v7x
topology: tpu7x:2x2x1
jax: 0.10.0
libtpu: 0.0.40
codegen_flags: <defaults>
</compile_context>

<pallas_src>
import functools

import jax
import jax.numpy as jnp
from jax import lax
from jax.experimental import pallas as pl
from jax.experimental.pallas import tpu as pltpu

_EPS = 1e-12  # F.normalize eps


# ---------------------------------------------------------------------------
# Kernel 1: full-table row-wise L2 normalization (lane-dense tiled pass).
# ---------------------------------------------------------------------------
def _normalize_kernel(x_ref, o_ref):
    x = x_ref[...].astype(jnp.float32)
    sumsq = jnp.sum(x * x, axis=-1, keepdims=True)
    # 1 / max(||x||, eps)  ==  rsqrt(max(sumsq, eps^2))  (sqrt is monotone);
    # rsqrt runs on the EUP slot instead of a VPU divide sequence.
    inv = lax.rsqrt(jnp.maximum(sumsq, jnp.float32(_EPS * _EPS)))
    o_ref[...] = x * inv


def l2_normalize_rows(table, *, rows_per_step=512):
    """Row-wise L2 normalize a [N, D] table with a tiled Pallas pass."""
    n_rows, d = table.shape
    te = n_rows if n_rows <= rows_per_step else rows_per_step
    grid = (pl.cdiv(n_rows, te),)
    return pl.pallas_call(
        _normalize_kernel,
        out_shape=jax.ShapeDtypeStruct((n_rows, d), jnp.float32),
        grid_spec=pltpu.PrefetchScalarGridSpec(
            num_scalar_prefetch=0,
            grid=grid,
            in_specs=[pl.BlockSpec((te, d), lambda i: (i, 0))],
            out_specs=pl.BlockSpec((te, d), lambda i: (i, 0)),
        ),
        compiler_params=pltpu.CompilerParams(
            dimension_semantics=("parallel",)),
        cost_estimate=pl.CostEstimate(
            flops=int(3 * n_rows * d),
            transcendentals=int(n_rows),
            bytes_accessed=int(2 * n_rows * d * 4)),
    )(table)


# ---------------------------------------------------------------------------
# Kernel 2: fused gather + (h + r - t) over TB triples per grid step.
# ---------------------------------------------------------------------------
def _gather_combine_kernel(ids_ref,            # SMEM [3, N] i32 (scalar prefetch)
                           ent_ref, rel_ref,   # VMEM-resident tables [E,D],[R,D]
                           out_ref,            # VMEM output block [TB, D]
                           *, tb):
    i = pl.program_id(0)
    base = pl.multiple_of(i * tb, tb)
    rows = []
    for j in range(tb):                        # small static unroll (tb <= 32)
        idx = base + j
        h = ent_ref[pl.ds(ids_ref[0, idx], 1), :]
        r = rel_ref[pl.ds(ids_ref[1, idx], 1), :]
        t = ent_ref[pl.ds(ids_ref[2, idx], 1), :]
        rows.append(h + r - t)
    # Single dense (TB, D) store (unmasked vst, full sublanes).
    out_ref[...] = jnp.concatenate(rows, axis=0)


def transe_forward(entity_emb, relation_emb, batch, corrupted_batch, *, tb=8):
    """Pallas implementation of TransE.forward.

    entity_emb:   [E, D] float32
    relation_emb: [R, D] float32
    batch, corrupted_batch: [B, 3] int32
    returns: (batch_energies [B, D], corr_batch_energies [B, D])
    """
    B = batch.shape[0]
    E, D = entity_emb.shape
    R = relation_emb.shape[0]

    # The module normalizes the full entity table on every forward call.
    ent_norm = l2_normalize_rows(entity_emb)

    # TODO(synk): for tables larger than ~1/4 of VMEM (generation-aware via
    # pltpu.get_tpu_info().vmem_capacity_bytes; v7x has only 64 MiB), switch
    # to an HBM-resident manual-DMA gather (memory_space=pl.ANY + P4 double
    # buffering) instead of the VMEM-resident tables used here.

    # Fuse batch & corrupted into one 2B-triple batch; [3, N] id layout keeps
    # the long axis last so SMEM padding stays benign.
    ids = jnp.concatenate([batch, corrupted_batch], axis=0).astype(jnp.int32)
    n = ids.shape[0]                               # 2B
    n_pad = int(pl.cdiv(n, tb)) * tb
    if n_pad != n:
        ids = jnp.pad(ids, ((0, n_pad - n), (0, 0)))   # pad rows use id 0 (valid)
    ids_t = ids.T                                  # [3, n_pad]

    grid = (n_pad // tb,)
    kernel = functools.partial(_gather_combine_kernel, tb=tb)

    out = pl.pallas_call(
        kernel,
        out_shape=jax.ShapeDtypeStruct((n_pad, D), jnp.float32),
        grid_spec=pltpu.PrefetchScalarGridSpec(
            num_scalar_prefetch=1,
            grid=grid,
            in_specs=[
                # Whole tables resident in VMEM (constant block index).
                pl.BlockSpec((E, D), lambda i, ids: (0, 0)),
                pl.BlockSpec((R, D), lambda i, ids: (0, 0)),
            ],
            out_specs=pl.BlockSpec((tb, D), lambda i, ids: (i, 0)),
        ),
        compiler_params=pltpu.CompilerParams(
            dimension_semantics=("parallel",)),
        cost_estimate=pl.CostEstimate(
            flops=int(2 * n_pad * D),
            transcendentals=0,
            bytes_accessed=int((E * D + R * D + 4 * n_pad * D) * 4
                               + 3 * n_pad * 4)),
    )(ids_t, ent_norm, relation_emb)

    return out[:B], out[B:n]


# ---------------------------------------------------------------------------
# Init + plain-JAX reference (mirrors the PyTorch module).
# ---------------------------------------------------------------------------
def init_transe_params(key, num_entities, num_relations, num_dims):
    bound = 6.0 / (num_dims ** 0.5)
    k_e, k_r = jax.random.split(key)
    entity_emb = jax.random.uniform(
        k_e, (num_entities, num_dims), jnp.float32, -bound, bound)
    relation_emb = jax.random.uniform(
        k_r, (num_relations, num_dims), jnp.float32, -bound, bound)
    # relations are L2-normalized once at init (per the module __init__)
    rel_nrm = jnp.sqrt(jnp.sum(relation_emb * relation_emb, axis=1, keepdims=True))
    relation_emb = relation_emb / jnp.maximum(rel_nrm, _EPS)
    return entity_emb, relation_emb


def transe_reference(entity_emb, relation_emb, batch, corrupted_batch):
    ent_nrm = jnp.sqrt(jnp.sum(entity_emb * entity_emb, axis=1, keepdims=True))
    ent = entity_emb / jnp.maximum(ent_nrm, _EPS)

    def energies(ids):
        h = ent[ids[:, 0]]
        r = relation_emb[ids[:, 1]]
        t = ent[ids[:, 2]]
        return h + r - t

    return energies(batch), energies(corrupted_batch)


if __name__ == "__main__":
    NUM_ENTITIES = 64
    NUM_RELATIONS = 16
    NUM_DIMS = 128      # lane-aligned embedding dim
    BATCH = 8

    key = jax.random.PRNGKey(0)
    k_params, k_b, k_c = jax.random.split(key, 3)

    entity_emb, relation_emb = init_transe_params(
        k_params, NUM_ENTITIES, NUM_RELATIONS, NUM_DIMS)

    kb_h, kb_r, kb_t = jax.random.split(k_b, 3)
    batch = jnp.stack([
        jax.random.randint(kb_h, (BATCH,), 0, NUM_ENTITIES, jnp.int32),
        jax.random.randint(kb_r, (BATCH,), 0, NUM_RELATIONS, jnp.int32),
        jax.random.randint(kb_t, (BATCH,), 0, NUM_ENTITIES, jnp.int32),
    ], axis=1)

    kc_h, kc_r, kc_t = jax.random.split(k_c, 3)
    corrupted_batch = jnp.stack([
        jax.random.randint(kc_h, (BATCH,), 0, NUM_ENTITIES, jnp.int32),
        jax.random.randint(kc_r, (BATCH,), 0, NUM_RELATIONS, jnp.int32),
        jax.random.randint(kc_t, (BATCH,), 0, NUM_ENTITIES, jnp.int32),
    ], axis=1)

    out_b, out_c = transe_forward(entity_emb, relation_emb, batch, corrupted_batch)
    jax.block_until_ready((out_b, out_c))

    ref_b, ref_c = transe_reference(entity_emb, relation_emb, batch, corrupted_batch)
    assert out_b.shape == (BATCH, NUM_DIMS) and out_c.shape == (BATCH, NUM_DIMS)
    assert jnp.allclose(out_b, ref_b, atol=1e-5, rtol=1e-5)
    assert jnp.allclose(out_c, ref_c, atol=1e-5, rtol=1e-5)

    print("KERNEL_OK")
</pallas_src>

<mosaic_0001>
module attributes {stable_mosaic.version = 11 : i64} {
  func.func @_normalize_kernel(%arg0: i32, %arg1: memref<64x128xf32, #tpu.memory_space<vmem>>, %arg2: memref<64x128xf32, #tpu.memory_space<vmem>>) attributes {dimension_semantics = [#tpu.dimension_semantics<parallel>], iteration_bounds = array<i64: 1>, scalar_prefetch = 0 : i64, scratch_operands = 0 : i64, tpu.core_type = #tpu.core_type<tc>, window_params = [{transform_indices = @transform_0, window_bounds = array<i64: 64, 128>}, {transform_indices = @transform_1, window_bounds = array<i64: 64, 128>}]} {
    %c0 = arith.constant 0 : index
    %c0_0 = arith.constant 0 : index
    %0 = vector.load %arg1[%c0, %c0_0] : memref<64x128xf32, #tpu.memory_space<vmem>>, vector<64x128xf32>
    %1 = arith.mulf %0, %0 : vector<64x128xf32>
    %cst = arith.constant dense<0.000000e+00> : vector<64xf32>
    %2 = vector.multi_reduction <add>, %1, %cst [1] : vector<64x128xf32> to vector<64xf32>
    %3 = vector.shape_cast %2 : vector<64xf32> to vector<64x1xf32>
    %cst_1 = arith.constant 1.000000e-24 : f32
    %4 = vector.broadcast %cst_1 : f32 to vector<64x1xf32>
    %5 = arith.maximumf %3, %4 : vector<64x1xf32>
    %6 = math.rsqrt %5 : vector<64x1xf32>
    %7 = vector.broadcast %6 : vector<64x1xf32> to vector<64x128xf32>
    %8 = arith.mulf %0, %7 : vector<64x128xf32>
    %c0_2 = arith.constant 0 : index
    %c0_3 = arith.constant 0 : index
    %9 = vector.load %arg2[%c0_2, %c0_3] : memref<64x128xf32, #tpu.memory_space<vmem>>, vector<64x128xf32>
    tpu.vector_store %arg2[%c0_2, %c0_3], %8 {strides = array<i32>} : memref<64x128xf32, #tpu.memory_space<vmem>>, vector<64x128xf32>,
    return
  }
  func.func @transform_0(%arg0: i32) -> (i32, i32) {
    %c0_i32 = arith.constant 0 : i32
    %c0_i32_0 = arith.constant 0 : i32
    return %arg0, %c0_i32 : i32, i32
  }
  func.func @transform_1(%arg0: i32) -> (i32, i32) {
    %c0_i32 = arith.constant 0 : i32
    %c0_i32_0 = arith.constant 0 : i32
    return %arg0, %c0_i32 : i32, i32
  }
}

</mosaic_0001>

<llo_original>
// kernel: tpu_custom_call.1
$region0: #{tpu_custom_call.1}
  #allocation0 [shape = 'u32[]', space=smem, size = 0x4, offset = 0x4, fixed_abs, tag = 'smem constant byte address 0x4 - core index']
  #allocation1 [shape = 'u32[144,128]{1,0:T(1,128)}', space=vmem, size = 0x12000, scoped, tag = 'internal scratch']
  %s0 = inlined_call_operand.hbm [shape: f32[64,128], index: 0, kind: input, shape index: {}]
  %s1 = inlined_call_operand.hbm [shape: f32[64,128], index: 1, kind: output, shape index: {}]
  %s2 = sld [smem:[#allocation0]]
  $region18: #{tpu_custom_call.1} parent=0
    _
  %s4 = ssub.s32 1, %s2
  %s5 = scalar_select 0, %s4, %s2
  $region1: #{tpu_custom_call.1} parent=0
    #allocation2 [shape = 'u8[32768]{0}', space=vmem, size = 0x8000, scoped, tag = 'input window, operand 0, single buffered']
    #allocation3 [shape = 's32[1]{0}', space=sflag, size = 0x4, scoped, tag = 'scoped memory for tpu_custom_call.1']
    #allocation4 [shape = 's32[1]{0}', space=sflag, size = 0x4, scoped, tag = 'scoped memory for tpu_custom_call.1']
    #allocation5 [shape = 'u8[32768]{0}', space=vmem, size = 0x8000, scoped, tag = 'output window, operand 0, single buffered']
    %6 = vsyncpa [#allocation3], 0
    %7 = vsyncpa [#allocation4], 0
    // Predicated region
    $region2: #{tpu_custom_call.1} parent=1 // pred_check
      _
    $region3: #{tpu_custom_call.1} parent=1 // pred_check_branch
      %9 = sbr.rel (0) target = $region5
    $region4: #{tpu_custom_call.1} parent=1 // pred_region
      %s11 = ssub.s32 1024, 1024
      %12 = vsyncadd [#allocation3], %s11
      %s13 = sshll.u32 [#allocation2], 4
      %s14 = int_to_ptr.vmem [resolvable:$true] %s13
      %19 = dma.hbm_to_vmem [thread:$0]  %s0, 1024, %s14, [#allocation3], 128, 128, 8
    $region5: #{tpu_custom_call.1} parent=1 // pred_fallthru
      _
    // Predicated region
    $region6: #{tpu_custom_call.1} parent=1 // pred_check
      _
    $region7: #{tpu_custom_call.1} parent=1 // pred_check_branch
      %21 = sbr.rel (0) target = $region9
    $region8: #{tpu_custom_call.1} parent=1 // pred_region
      %22 = dma.done [#allocation3], 1024
    $region9: #{tpu_custom_call.1} parent=1 // pred_fallthru
      _
    %v23 = vld [vmem:[#allocation2] sm:$0xff]
    %v24 = vld [vmem:[#allocation2 + $0x8] sm:$0xff]
    %v25 = vld [vmem:[#allocation2 + $0x10] sm:$0xff]
    %v26 = vld [vmem:[#allocation2 + $0x18] sm:$0xff]
    %v27 = vld [vmem:[#allocation2 + $0x20] sm:$0xff]
    %v28 = vld [vmem:[#allocation2 + $0x28] sm:$0xff]
    %v29 = vld [vmem:[#allocation2 + $0x30] sm:$0xff]
    %v30 = vld [vmem:[#allocation2 + $0x38] sm:$0xff]
    %v31 = vmul.f32 %v23, %v23
    %v32 = vmul.f32 %v24, %v24
    %v33 = vmul.f32 %v25, %v25
    %v34 = vmul.f32 %v26, %v26
    %v35 = vmul.f32 %v27, %v27
    %v36 = vmul.f32 %v28, %v28
    %v37 = vmul.f32 %v29, %v29
    %v38 = vmul.f32 %v30, %v30
    %39 = vadd.xlane.f32.xlu0 %v31
    %v40 = vpop.xlane.xlu0 %39
    %41 = vadd.xlane.f32.xlu0 %v32
    %v42 = vpop.xlane.xlu0 %41
    %43 = vadd.xlane.f32.xlu0 %v33
    %v44 = vpop.xlane.xlu0 %43
    %45 = vadd.xlane.f32.xlu0 %v34
    %v46 = vpop.xlane.xlu0 %45
    %47 = vadd.xlane.f32.xlu0 %v35
    %v48 = vpop.xlane.xlu0 %47
    %49 = vadd.xlane.f32.xlu0 %v36
    %v50 = vpop.xlane.xlu0 %49
    %51 = vadd.xlane.f32.xlu0 %v37
    %v52 = vpop.xlane.xlu0 %51
    %53 = vadd.xlane.f32.xlu0 %v38
    %v54 = vpop.xlane.xlu0 %53
    %v55 = vmax.f32 %v40, 1e-24
    %v56 = vmax.f32 %v42, 1e-24
    %v57 = vmax.f32 %v44, 1e-24
    %v58 = vmax.f32 %v46, 1e-24
    %v59 = vmax.f32 %v48, 1e-24
    %v60 = vmax.f32 %v50, 1e-24
    %v61 = vmax.f32 %v52, 1e-24
    %v62 = vmax.f32 %v54, 1e-24
    %v63 = vrsqrt.pop %v55
    %v64 = vrsqrt.pop %v56
    %v65 = vrsqrt.pop %v57
    %v66 = vrsqrt.pop %v58
    %v67 = vrsqrt.pop %v59
    %v68 = vrsqrt.pop %v60
    %v69 = vrsqrt.pop %v61
    %v70 = vrsqrt.pop %v62
    %v71 = vmul.f32 %v23, %v63
    %v72 = vmul.f32 %v24, %v64
    %v73 = vmul.f32 %v25, %v65
    %v74 = vmul.f32 %v26, %v66
    %v75 = vmul.f32 %v27, %v67
    %v76 = vmul.f32 %v28, %v68
    %v77 = vmul.f32 %v29, %v69
    %v78 = vmul.f32 %v30, %v70
    %79 = vst [vmem:[#allocation5] sm:$0xff] %v71
    %80 = vst [vmem:[#allocation5 + $0x8] sm:$0xff] %v72
    %81 = vst [vmem:[#allocation5 + $0x10] sm:$0xff] %v73
    %82 = vst [vmem:[#allocation5 + $0x18] sm:$0xff] %v74
    %83 = vst [vmem:[#allocation5 + $0x20] sm:$0xff] %v75
    %84 = vst [vmem:[#allocation5 + $0x28] sm:$0xff] %v76
    %85 = vst [vmem:[#allocation5 + $0x30] sm:$0xff] %v77
    %86 = vst [vmem:[#allocation5 + $0x38] sm:$0xff] %v78
    // Predicated region
    $region10: #{tpu_custom_call.1} parent=1 // pred_check
      _
    $region11: #{tpu_custom_call.1} parent=1 // pred_check_branch
      %88 = sbr.rel (0) target = $region13
    $region12: #{tpu_custom_call.1} parent=1 // pred_region
      %s90 = ssub.s32 1024, 1024
      %91 = vsyncadd [#allocation4], %s90
      %s92 = sshll.u32 [#allocation5], 4
      %s93 = int_to_ptr.vmem [resolvable:$true] %s92
      %98 = dma.vmem_to_hbm [thread:$0]  %s93, 1024, %s1, [#allocation4], 128, 128, 8
    $region13: #{tpu_custom_call.1} parent=1 // pred_fallthru
      _
    // Predicated region
    $region14: #{tpu_custom_call.1} parent=1 // pred_check
      _
    $region15: #{tpu_custom_call.1} parent=1 // pred_check_branch
      %100 = sbr.rel (0) target = $region17
    $region16: #{tpu_custom_call.1} parent=1 // pred_region
      %101 = dma.done [#allocation4], 1024
    $region17: #{tpu_custom_call.1} parent=1 // pred_fallthru
      _
    %102 = vsyncpa [#allocation3], 1
    %103 = vsyncpa [#allocation4], 1

</llo_original>
